<compile_context>
chip_gen: v7x
topology: tpu7x:2x2x1
jax: 0.10.0
libtpu: 0.0.40
codegen_flags: <defaults>
</compile_context>

<pallas_src>
import functools
import math

import jax
import jax.numpy as jnp
import numpy as np
from jax import lax
from jax.experimental import pallas as pl
from jax.experimental.pallas import tpu as pltpu

# ----------------------------- toy configuration -----------------------------
# Image encoder (ViT-like)
CHANNELS = 3
TEMPORAL_PATCH = 2
PATCH = 2
PATCH_DIM = CHANNELS * TEMPORAL_PATCH * PATCH * PATCH          # 24
GRID_T, GRID_H, GRID_W = 1, 8, 8
NUM_PATCHES = GRID_T * GRID_H * GRID_W                          # 64
SPATIAL_MERGE = 2
VIS_DIM = 32
VIS_HEADS = 2
VIS_HEAD_DIM = VIS_DIM // VIS_HEADS                             # 16
VIS_MLP = 64
VIS_BLOCKS = 1
MERGER_HIDDEN = 64

# Decoder (Qwen-like)
VOCAB = 128
DEC_DIM = 32
N_HEADS = 2
N_KV_HEADS = 1
HEAD_DIM = 16
ROTARY_PCT = 1.0
ROTARY_BASE = 10000.0
N_ELEM = int(ROTARY_PCT * HEAD_DIM)                             # 16
HALF = N_ELEM // 2                                              # 8
DEC_MLP = 64
DEC_BLOCKS = 2
MROPE_SECTION = [2, 3, 3]                                       # sums to HALF
IMAGE_TOKEN_ID = 10
MAX_SEQ = 32
SEQ = 24                                                        # 1 + 16 img + 7 text
RMS_EPS = 1e-6

# Shared BlockSpecs (no grid: whole arrays, single invocation).
_VMEM = pl.BlockSpec(memory_space=pltpu.MemorySpace.VMEM)
_SMEM = pl.BlockSpec(memory_space=pltpu.MemorySpace.SMEM)
_ANY = pl.BlockSpec(memory_space=pl.ANY)


# ------------------------------- kernel helpers -------------------------------
def _rmsnorm(x, w, eps):
    """RMSNorm on a loaded f32 value. w is (1, D)."""
    var = jnp.mean(x * x, axis=-1, keepdims=True)
    return (x * lax.rsqrt(var + eps)) * w


def _layer_core(x, n1, wqkv, bqkv, wo3, n2, wgu, wd, cosq, sinq, *,
                n_heads, n_kv_heads, head_dim, mlp_dim, eps, causal):
    """Fused RMSNorm+QKV+RoPE+attention+out-proj+residual+RMSNorm+MLP+residual.

    wqkv columns are packed as [q, q_rot, k, k_rot, v] with the rotate-half
    permutation and the 1/sqrt(head_dim) scale folded into the weights, so
    RoPE is a full-width FMA (no lane slicing/concat inside RoPE).
    Returns (x_out, roped_k (S, KV*HD), v (S, KV*HD)).
    """
    S = x.shape[0]
    QW = n_heads * head_dim
    KW = n_kv_heads * head_dim
    group = n_heads // n_kv_heads

    # ---- attention sub-block ----
    h = _rmsnorm(x, n1, eps).astype(jnp.bfloat16)
    qkv = jnp.dot(h, wqkv, preferred_element_type=jnp.float32) + bqkv   # (S, 2QW+3KW)

    # Full-width RoPE FMA (scale already folded into the q / q_rot columns).
    q = qkv[:, :QW] * cosq + qkv[:, QW:2 * QW] * sinq                   # (S, QW)
    k = (qkv[:, 2 * QW:2 * QW + KW] * cosq[:, :KW]
         + qkv[:, 2 * QW + KW:2 * QW + 2 * KW] * sinq[:, :KW])          # (S, KW)
    v = qkv[:, 2 * QW + 2 * KW:]                                        # (S, KW)

    # Batched all-heads attention over an (H, S, HD) layout (one MXU pass per
    # matmul instead of a per-head Python loop + lane concat).
    # TODO(synk): at real sizes the head axis becomes a "parallel" grid dim and
    # the shared KV head is not duplicated (flash-style KV tiling).
    q3 = jnp.stack([q[:, i * head_dim:(i + 1) * head_dim]
                    for i in range(n_heads)], axis=0)
    k3 = jnp.stack([k[:, (i // group) * head_dim:((i // group) + 1) * head_dim]
                    for i in range(n_heads)], axis=0)
    v3 = jnp.stack([v[:, (i // group) * head_dim:((i // group) + 1) * head_dim]
                    for i in range(n_heads)], axis=0)

    s3 = jnp.einsum("hqd,hkd->hqk", q3.astype(jnp.bfloat16),
                    k3.astype(jnp.bfloat16),
                    preferred_element_type=jnp.float32)                 # (H, S, S)
    if causal:
        row = lax.broadcasted_iota(jnp.int32, (S, S), 0)
        col = lax.broadcasted_iota(jnp.int32, (S, S), 1)
        s3 = jnp.where((col <= row)[None, :, :], s3, jnp.float32(-1e9))

    m = jnp.max(s3, axis=-1, keepdims=True)
    p = jnp.exp(s3 - m)
    l = jnp.sum(p, axis=-1, keepdims=True)
    pv = jnp.einsum("hqk,hkd->hqd", p.astype(jnp.bfloat16),
                    v3.astype(jnp.bfloat16),
                    preferred_element_type=jnp.float32)                 # (H, S, HD)
    o3 = pv * pl.reciprocal(l, approx=True)        # normalize after PV matmul

    # Out-projection with per-head weight slabs + cheap reduce over the leading
    # head axis (no in-kernel transpose / lane concat).
    y3 = jnp.einsum("hqd,hde->hqe", o3.astype(jnp.bfloat16), wo3,
                    preferred_element_type=jnp.float32)                 # (H, S, D)
    x = x + jnp.sum(y3, axis=0)

    # ---- MLP sub-block ----
    h2 = _rmsnorm(x, n2, eps).astype(jnp.bfloat16)
    gu = jnp.dot(h2, wgu, preferred_element_type=jnp.float32)           # (S, 2*MLP)
    g = gu[:, :mlp_dim]
    u = gu[:, mlp_dim:]
    a = g * (1.0 / (1.0 + jnp.exp(-g))) * u                             # SiLU * up
    x = x + jnp.dot(a.astype(jnp.bfloat16), wd,
                    preferred_element_type=jnp.float32)
    return x, k, v


# --------------------------- fused per-layer kernels ---------------------------
def _decoder_layer_kernel(pos_ref, x_ref, n1_ref, wqkv_ref, bqkv_ref, wo_ref,
                          n2_ref, wgu_ref, wd_ref, cosq_ref, sinq_ref,
                          kc_ref, vc_ref,                 # HBM cache (aliased)
                          x_out_ref, kc_out_ref, vc_out_ref,
                          k_buf, v_buf, sem, *,
                          n_heads, n_kv_heads, head_dim, mlp_dim, eps):
    del kc_ref, vc_ref  # same HBM buffers as kc_out_ref / vc_out_ref (aliased)
    x_out, k_new, v_new = _layer_core(
        x_ref[...], n1_ref[...], wqkv_ref[...], bqkv_ref[...], wo_ref[...],
        n2_ref[...], wgu_ref[...], wd_ref[...], cosq_ref[...], sinq_ref[...],
        n_heads=n_heads, n_kv_heads=n_kv_heads, head_dim=head_dim,
        mlp_dim=mlp_dim, eps=eps, causal=True)
    x_out_ref[...] = x_out

    # In-place KV-cache update: DMA the freshly-roped K / V rows straight into
    # the HBM cache at input_pos (outputs alias the cache inputs, no XLA
    # dynamic_update_slice, no full-cache round trip).
    # TODO(synk): attention above uses only the current call's K/V (full
    # prefill semantics); incremental decode would read the updated cache.
    S = x_ref.shape[0]
    pos = pos_ref[0]
    k_buf[...] = k_new
    v_buf[...] = v_new
    ck = pltpu.make_async_copy(k_buf, kc_out_ref.at[pl.ds(pos, S), :], sem.at[0])
    cv = pltpu.make_async_copy(v_buf, vc_out_ref.at[pl.ds(pos, S), :], sem.at[1])
    ck.start()
    cv.start()
    ck.wait()
    cv.wait()


def _vision_layer_kernel(x_ref, n1_ref, wqkv_ref, bqkv_ref, wo_ref,
                         n2_ref, wgu_ref, wd_ref, cosq_ref, sinq_ref, pn_ref,
                         x_out_ref, *, n_heads, n_kv_heads, head_dim, mlp_dim,
                         eps, apply_post_norm):
    x_out, _, _ = _layer_core(
        x_ref[...], n1_ref[...], wqkv_ref[...], bqkv_ref[...], wo_ref[...],
        n2_ref[...], wgu_ref[...], wd_ref[...], cosq_ref[...], sinq_ref[...],
        n_heads=n_heads, n_kv_heads=n_kv_heads, head_dim=head_dim,
        mlp_dim=mlp_dim, eps=eps, causal=False)
    if apply_post_norm:                       # fused final vision RMSNorm
        x_out = _rmsnorm(x_out, pn_ref[...], eps)
    x_out_ref[...] = x_out


def fused_decoder_layer(pos, x, bp, cosq, sinq, k_cache, v_cache):
    S, D = x.shape
    kvw = k_cache.shape[1]
    kern = functools.partial(_decoder_layer_kernel, n_heads=N_HEADS,
                             n_kv_heads=N_KV_HEADS, head_dim=HEAD_DIM,
                             mlp_dim=DEC_MLP, eps=RMS_EPS)
    out_shape = (jax.ShapeDtypeStruct((S, D), jnp.float32),
                 jax.ShapeDtypeStruct(k_cache.shape, k_cache.dtype),
                 jax.ShapeDtypeStruct(v_cache.shape, v_cache.dtype))
    return pl.pallas_call(
        kern,
        out_shape=out_shape,
        in_specs=[_SMEM] + [_VMEM] * 10 + [_ANY, _ANY],
        out_specs=(_VMEM, _ANY, _ANY),
        scratch_shapes=[pltpu.VMEM((S, kvw), jnp.float32),
                        pltpu.VMEM((S, kvw), jnp.float32),
                        pltpu.SemaphoreType.DMA((2,))],
        input_output_aliases={11: 1, 12: 2},
    )(pos, x, bp["norm1_w"], bp["wqkv"], bp["bqkv"], bp["wo3"],
      bp["norm2_w"], bp["wgu"], bp["wd"], cosq, sinq, k_cache, v_cache)


def fused_vision_layer(x, bp, cosq, sinq, post_norm_w, *, apply_post_norm):
    S, D = x.shape
    kern = functools.partial(_vision_layer_kernel, n_heads=VIS_HEADS,
                             n_kv_heads=VIS_HEADS, head_dim=VIS_HEAD_DIM,
                             mlp_dim=VIS_MLP, eps=RMS_EPS,
                             apply_post_norm=apply_post_norm)
    return pl.pallas_call(
        kern,
        out_shape=jax.ShapeDtypeStruct((S, D), jnp.float32),
        in_specs=[_VMEM] * 11,
        out_specs=_VMEM,
    )(x, bp["norm1_w"], bp["wqkv"], bp["bqkv"], bp["wo3"],
      bp["norm2_w"], bp["wgu"], bp["wd"], cosq, sinq, post_norm_w)


# --------------------------- small standalone kernels --------------------------
def _matmul_kernel(a_ref, w_ref, o_ref):
    o_ref[...] = jnp.dot(a_ref[...].astype(jnp.bfloat16), w_ref[...],
                         preferred_element_type=jnp.float32)


def matmul_pallas(a, w):
    """a: (M, K) f32 @ w: (K, N) bf16 -> (M, N) f32."""
    M, _ = a.shape
    N = w.shape[1]
    # TODO(synk): at real sizes add (M,N,K) grid + VMEM accumulator.
    return pl.pallas_call(
        _matmul_kernel, out_shape=jax.ShapeDtypeStruct((M, N), jnp.float32))(a, w)


def _merger_kernel(x_ref, w1_ref, b1_ref, w2_ref, b2_ref, o_ref):
    h = jnp.dot(x_ref[...].astype(jnp.bfloat16), w1_ref[...],
                preferred_element_type=jnp.float32) + b1_ref[...]
    c = 0.7978845608028654                                      # sqrt(2/pi)
    h = 0.5 * h * (1.0 + jnp.tanh(c * (h + 0.044715 * h * h * h)))
    o_ref[...] = jnp.dot(h.astype(jnp.bfloat16), w2_ref[...],
                         preferred_element_type=jnp.float32) + b2_ref[...]


def merger_pallas(x, w1, b1, w2, b2):
    M = x.shape[0]
    N = w2.shape[1]
    return pl.pallas_call(
        _merger_kernel, out_shape=jax.ShapeDtypeStruct((M, N), jnp.float32))(
        x, w1, b1, w2, b2)


def _final_logits_kernel(x_ref, nw_ref, wt_ref, o_ref, *, eps):
    h = _rmsnorm(x_ref[...], nw_ref[...], eps).astype(jnp.bfloat16)
    # Tied lm_head pre-transposed to (D, V): lane-dense plain matmul.
    # TODO(synk): at real vocab (~152k) grid over V tiles ("parallel").
    o_ref[...] = jnp.dot(h, wt_ref[...], preferred_element_type=jnp.float32)


def final_logits_pallas(x, norm_w, lm_head_t, eps=RMS_EPS):
    S, _ = x.shape
    V = lm_head_t.shape[1]
    return pl.pallas_call(
        functools.partial(_final_logits_kernel, eps=eps),
        out_shape=jax.ShapeDtypeStruct((S, V), jnp.float32))(x, norm_w, lm_head_t)


# ------------------------------- RoPE (glue) ----------------------------------
def build_rope(pos, n_elem, base):
    half = n_elem // 2
    theta = 1.0 / (base ** (jnp.arange(half, dtype=jnp.float32) * 2.0 / n_elem))
    freqs = pos.astype(jnp.float32)[:, None] * theta[None, :]   # (S, half)
    return jnp.cos(freqs), jnp.sin(freqs)


def rope_slabs(cos, sin, n_heads):
    """Full-width per-head [cos,cos] / [-sin,+sin] slabs for in-kernel RoPE FMA."""
    cos_cat = jnp.concatenate([cos, cos], axis=-1)
    sin_sgn = jnp.concatenate([-sin, sin], axis=-1)
    return (jnp.tile(cos_cat, (1, n_heads)).astype(jnp.float32),
            jnp.tile(sin_sgn, (1, n_heads)).astype(jnp.float32))


def merge_ropes(a, b, c, sections):
    """Mirrors QwenVL._merge_ropes (apply_multimodal_rotary_pos_emb)."""
    stacked = jnp.stack([a, b, c])                              # (3, S, half)
    idx = np.cumsum(sections)[:-1].tolist()
    splits = jnp.split(stacked, idx, axis=-1)
    return jnp.concatenate([m[i % 3] for i, m in enumerate(splits)], axis=-1)


# ---------------------------- parameter creation ------------------------------
def _init(key, shape, scale=0.02):
    return scale * jax.random.normal(key, shape, dtype=jnp.float32)


def _rot_half_cols(w, n_heads, head_dim):
    """Swap halves of each head's column block along the last axis."""
    half = head_dim // 2
    lead = w.shape[:-1]
    w = w.reshape(lead + (n_heads, head_dim))
    w = jnp.concatenate([w[..., half:], w[..., :half]], axis=-1)
    return w.reshape(lead + (n_heads * head_dim,))


def _pack_qkv(keys, dim, n_heads, n_kv_heads, head_dim):
    """Packed [q, q_rot, k, k_rot, v] projection, 1/sqrt(head_dim) folded into q."""
    scale = 1.0 / math.sqrt(head_dim)
    wq = _init(next(keys), (dim, n_heads * head_dim)) * scale
    wk = _init(next(keys), (dim, n_kv_heads * head_dim))
    wv = _init(next(keys), (dim, n_kv_heads * head_dim))
    bq = _init(next(keys), (1, n_heads * head_dim)) * scale
    bk = _init(next(keys), (1, n_kv_heads * head_dim))
    bv = _init(next(keys), (1, n_kv_heads * head_dim))
    wqkv = jnp.concatenate(
        [wq, _rot_half_cols(wq, n_heads, head_dim),
         wk, _rot_half_cols(wk, n_kv_heads, head_dim), wv], axis=1)
    bqkv = jnp.concatenate(
        [bq, _rot_half_cols(bq, n_heads, head_dim),
         bk, _rot_half_cols(bk, n_kv_heads, head_dim), bv], axis=1)
    return wqkv.astype(jnp.bfloat16), bqkv.astype(jnp.float32)


def init_params(key):
    keys = iter(jax.random.split(key, 64))
    bf = lambda shape: _init(next(keys), shape).astype(jnp.bfloat16)
    p = {}
    # image encoder
    p["patch_embed_w"] = bf((PATCH_DIM, VIS_DIM))
    vis_blocks = []
    for _ in range(VIS_BLOCKS):
        wqkv, bqkv = _pack_qkv(keys, VIS_DIM, VIS_HEADS, VIS_HEADS, VIS_HEAD_DIM)
        vis_blocks.append(dict(
            norm1_w=jnp.ones((1, VIS_DIM), jnp.float32),
            norm2_w=jnp.ones((1, VIS_DIM), jnp.float32),
            wqkv=wqkv, bqkv=bqkv,
            wo3=_init(next(keys), (VIS_HEADS, VIS_HEAD_DIM, VIS_DIM)).astype(
                jnp.bfloat16),
            wgu=bf((VIS_DIM, 2 * VIS_MLP)),
            wd=bf((VIS_MLP, VIS_DIM)),
        ))
    p["vis_blocks"] = vis_blocks
    p["vis_post_norm_w"] = jnp.ones((1, VIS_DIM), jnp.float32)
    merged_in = SPATIAL_MERGE * SPATIAL_MERGE * VIS_DIM
    p["merger_w1"] = bf((merged_in, MERGER_HIDDEN))
    p["merger_b1"] = jnp.zeros((1, MERGER_HIDDEN), jnp.float32)
    p["merger_w2"] = bf((MERGER_HIDDEN, DEC_DIM))
    p["merger_b2"] = jnp.zeros((1, DEC_DIM), jnp.float32)
    # decoder
    p["tok_embedding"] = _init(next(keys), (VOCAB, DEC_DIM))     # f32 (gather)
    p["lm_head_t"] = p["tok_embedding"].T.astype(jnp.bfloat16)   # tied, (D, V) bf16
    dec_blocks = []
    for _ in range(DEC_BLOCKS):
        wqkv, bqkv = _pack_qkv(keys, DEC_DIM, N_HEADS, N_KV_HEADS, HEAD_DIM)
        dec_blocks.append(dict(
            norm1_w=jnp.ones((1, DEC_DIM), jnp.float32),
            norm2_w=jnp.ones((1, DEC_DIM), jnp.float32),
            wqkv=wqkv, bqkv=bqkv,
            wo3=_init(next(keys), (N_HEADS, HEAD_DIM, DEC_DIM)).astype(
                jnp.bfloat16),
            wgu=bf((DEC_DIM, 2 * DEC_MLP)),
            wd=bf((DEC_MLP, DEC_DIM)),
        ))
    p["dec_blocks"] = dec_blocks
    p["final_norm_w"] = jnp.ones((1, DEC_DIM), jnp.float32)
    return p


def init_kv_cache():
    kvw = N_KV_HEADS * HEAD_DIM
    return [dict(k=jnp.zeros((MAX_SEQ, kvw), jnp.float32),
                 v=jnp.zeros((MAX_SEQ, kvw), jnp.float32))
            for _ in range(DEC_BLOCKS)]


# ------------------------------ image encoder ---------------------------------
def _vision_rope():
    hpos = jnp.repeat(jnp.arange(GRID_H), GRID_W)
    wpos = jnp.tile(jnp.arange(GRID_W), GRID_H)
    quarter = VIS_HEAD_DIM // 4
    theta = 1.0 / (ROTARY_BASE ** (jnp.arange(quarter, dtype=jnp.float32) * 2.0
                                   / (VIS_HEAD_DIM // 2)))
    fh = hpos.astype(jnp.float32)[:, None] * theta[None, :]
    fw = wpos.astype(jnp.float32)[:, None] * theta[None, :]
    freqs = jnp.concatenate([fh, fw], axis=-1)          # (P, VIS_HEAD_DIM//2)
    return jnp.cos(freqs), jnp.sin(freqs)


def image_encoder_forward(params, pixel_values):
    # Conv3d patch embedding == linear on flattened patches.
    x = matmul_pallas(pixel_values, params["patch_embed_w"])      # (P, VIS_DIM)
    cos, sin = _vision_rope()
    cosq, sinq = rope_slabs(cos, sin, VIS_HEADS)
    n = len(params["vis_blocks"])
    for i, bp in enumerate(params["vis_blocks"]):
        # TODO(synk): Qwen2.5-VL window-attention block reordering is not modeled.
        x = fused_vision_layer(x, bp, cosq, sinq, params["vis_post_norm_w"],
                               apply_post_norm=(i == n - 1))
    # spatial merger: group SPATIAL_MERGE x SPATIAL_MERGE windows (JAX glue).
    m = SPATIAL_MERGE
    x = x.reshape(GRID_H // m, m, GRID_W // m, m, VIS_DIM)
    x = x.transpose(0, 2, 1, 3, 4).reshape(-1, m * m * VIS_DIM)
    return merger_pallas(x, params["merger_w1"], params["merger_b1"],
                         params["merger_w2"], params["merger_b2"])   # (16, DEC_DIM)


def get_grid_thw():
    return np.array([[GRID_T, GRID_H, GRID_W]], dtype=np.int64)


# --------------------------------- decoder ------------------------------------
def decoder_forward(params, tokens, input_pos, kv_cache, input_embeds, rope,
                    mask=None):
    # TODO(synk): an externally supplied mask is not plumbed into the fused
    # attention kernel (causal mask is generated in-kernel via iota); this
    # matches the mask=None full-prefill path exercised below.
    if input_embeds is None:
        input_embeds = params["tok_embedding"][tokens]            # (1, S, DEC_DIM)
    x = input_embeds[0].astype(jnp.float32)
    cos, sin = rope
    cosq, sinq = rope_slabs(cos, sin, N_HEADS)
    pos = input_pos[:1].astype(jnp.int32)                         # (1,) start pos
    new_cache = []
    for li, bp in enumerate(params["dec_blocks"]):
        x, k_c, v_c = fused_decoder_layer(pos, x, bp, cosq, sinq,
                                          kv_cache[li]["k"], kv_cache[li]["v"])
        new_cache.append(dict(k=k_c, v=v_c))
    logits = final_logits_pallas(x, params["final_norm_w"], params["lm_head_t"])
    return {"logits": logits[None], "kv_cache": new_cache}


# ----------------------------------- QwenVL -----------------------------------
class QwenVLJax:
    """Mirrors ai_edge_torch QwenVL.forward semantics (prefill path)."""

    def __init__(self, params):
        self.params = params
        self.rope_pos_adjust = 0

    def _build_rope(self, rope_pos):
        return build_rope(rope_pos, N_ELEM, ROTARY_BASE)

    def _build_text_rope(self, input_pos):
        if input_pos.size > 1:
            self.rope_pos_adjust = 0
        return self._build_rope(input_pos + self.rope_pos_adjust)

    def _build_image_text_rope(self, image_pos, text_pos):
        pos = jnp.concatenate([jnp.zeros((1,), jnp.int32),
                               image_pos.astype(jnp.int32),
                               text_pos.astype(jnp.int32)])
        return self._build_rope(pos)

    def _merge_ropes(self, a, b, c):
        return merge_ropes(a, b, c, MROPE_SECTION)

    def _build_multimodal_rope(self, input_pos, grid_thw):
        height = int(grid_thw[0][1]) // SPATIAL_MERGE
        width = int(grid_thw[0][2]) // SPATIAL_MERGE
        image_pos_max = max(height, width)
        image_pos_count = height * width
        text_pos_start = image_pos_max + 1
        text_pos_count = int(input_pos.shape[0]) - image_pos_count - 1
        text_pos = jnp.arange(text_pos_start, text_pos_start + text_pos_count)
        self.rope_pos_adjust = image_pos_max - image_pos_count
        t_rope = self._build_image_text_rope(
            jnp.ones((image_pos_count,), jnp.int32), text_pos)
        h_rope = self._build_image_text_rope(
            jnp.repeat(jnp.arange(1, height + 1), width), text_pos)
        w_rope = self._build_image_text_rope(
            jnp.tile(jnp.arange(1, width + 1), height), text_pos)
        return (self._merge_ropes(t_rope[0], h_rope[0], w_rope[0]),
                self._merge_ropes(t_rope[1], h_rope[1], w_rope[1]))

    def forward(self, tokens, input_pos, kv_cache, mask=None, pixel_values=None):
        if pixel_values is None:
            return decoder_forward(self.params, tokens, input_pos, kv_cache,
                                   input_embeds=None,
                                   rope=self._build_text_rope(input_pos),
                                   mask=mask)
        input_embeds = self.params["tok_embedding"][tokens]        # (1, S, D)
        image_embeds = image_encoder_forward(self.params, pixel_values)[None]
        n_img = image_embeds.shape[1]
        input_embeds = jnp.concatenate(
            [input_embeds[:, :1, :], image_embeds, input_embeds[:, n_img + 1:, :]],
            axis=1)
        grid_thw = get_grid_thw()
        return decoder_forward(
            self.params, None, input_pos, kv_cache,
            input_embeds=input_embeds,
            rope=self._build_multimodal_rope(input_pos, grid_thw),
            mask=mask)


# ------------------------------------ main -------------------------------------
if __name__ == "__main__":
    root = jax.random.PRNGKey(0)
    k_params, k_pix, k_tok = jax.random.split(root, 3)

    params = init_params(k_params)
    model = QwenVLJax(params)

    tokens = jax.random.randint(k_tok, (1, SEQ), 0, VOCAB, dtype=jnp.int32)
    input_pos = jnp.arange(SEQ, dtype=jnp.int32)
    pixel_values = 0.5 * jax.random.normal(
        k_pix, (NUM_PATCHES, PATCH_DIM), dtype=jnp.float32)
    kv_cache = init_kv_cache()

    # multimodal prefill (exercises image encoder + multimodal RoPE path)
    out_mm = model.forward(tokens, input_pos, kv_cache,
                           mask=None, pixel_values=pixel_values)
    # text-only path (exercises _build_text_rope branch)
    out_txt = model.forward(tokens, input_pos, kv_cache,
                            mask=None, pixel_values=None)

    jax.block_until_ready(out_mm["logits"])
    jax.block_until_ready(out_txt["logits"])

    assert out_mm["logits"].shape == (1, SEQ, VOCAB)
    assert out_txt["logits"].shape == (1, SEQ, VOCAB)
    assert out_mm["kv_cache"][0]["k"].shape == (MAX_SEQ, N_KV_HEADS * HEAD_DIM)
    assert bool(jnp.all(jnp.isfinite(out_mm["logits"])))
    assert bool(jnp.all(jnp.isfinite(out_txt["logits"])))

    print("KERNEL_OK")
</pallas_src>

<mosaic_0001>
module attributes {stable_mosaic.version = 11 : i64} {
  func.func @_matmul_kernel(%arg0: memref<64x24xf32, #tpu.memory_space<vmem>>, %arg1: memref<24x32xbf16, #tpu.memory_space<vmem>>, %arg2: memref<64x32xf32, #tpu.memory_space<vmem>>) attributes {dimension_semantics = [], scalar_prefetch = 0 : i64, scratch_operands = 0 : i64, tpu.core_type = #tpu.core_type<tc>} {
    %c0 = arith.constant 0 : index
    %c0_0 = arith.constant 0 : index
    %0 = vector.load %arg0[%c0, %c0_0] : memref<64x24xf32, #tpu.memory_space<vmem>>, vector<64x24xf32>
    %1 = arith.truncf %0 : vector<64x24xf32> to vector<64x24xbf16>
    %c0_1 = arith.constant 0 : index
    %c0_2 = arith.constant 0 : index
    %2 = vector.load %arg1[%c0_1, %c0_2] : memref<24x32xbf16, #tpu.memory_space<vmem>>, vector<24x32xbf16>
    %cst = arith.constant dense<0.000000e+00> : vector<64x32xf32>
    %3 = tpu.matmul %1, %2, %cst {dimension_numbers = #tpu.dot_dimension_numbers<[1], [0], [0], [1], [0, 0, 1, 1], [], []>} : vector<64x24xbf16>, vector<24x32xbf16>, vector<64x32xf32> -> vector<64x32xf32>
    %c0_3 = arith.constant 0 : index
    %c0_4 = arith.constant 0 : index
    %4 = vector.load %arg2[%c0_3, %c0_4] : memref<64x32xf32, #tpu.memory_space<vmem>>, vector<64x32xf32>
    tpu.vector_store %arg2[%c0_3, %c0_4], %3 {strides = array<i32>} : memref<64x32xf32, #tpu.memory_space<vmem>>, vector<64x32xf32>,
    return
  }
}

</mosaic_0001>

<llo_original>
// kernel: tpu_custom_call.1
$region0: #{tpu_custom_call.1}
  #allocation0 [shape = 'u32[]', space=smem, size = 0x4, offset = 0x4, fixed_abs, tag = 'smem constant byte address 0x4 - core index']
  #allocation1 [shape = 'u32[144,128]{1,0:T(1,128)}', space=vmem, size = 0x12000, scoped, tag = 'internal scratch']
  %s0 = inlined_call_operand.vmem [shape: f32[64,24], index: 0, kind: input, shape index: {}]
  %s1 = inlined_call_operand.vmem [shape: bf16[24,32], index: 1, kind: input, shape index: {}]
  %s2 = inlined_call_operand.vmem [shape: f32[64,32], index: 2, kind: output, shape index: {}]
  %s3 = sld [smem:[#allocation0]]
  $region18: #{tpu_custom_call.1} parent=0
    _
  %s5 = ssub.s32 1, %s3
  %s6 = scalar_select 0, %s5, %s3
  // Predicated region
  $region2: #{tpu_custom_call.1} parent=0 // pred_check
    _
  $region3: #{tpu_custom_call.1} parent=0 // pred_check_branch
    %8 = sbr.rel (0) target = $region5
  $region4: #{tpu_custom_call.1} parent=0 // pred_region
    _
  $region5: #{tpu_custom_call.1} parent=0 // pred_fallthru
    _
  // Predicated region
  $region6: #{tpu_custom_call.1} parent=0 // pred_check
    _
  $region7: #{tpu_custom_call.1} parent=0 // pred_check_branch
    %10 = sbr.rel (0) target = $region9
  $region8: #{tpu_custom_call.1} parent=0 // pred_region
    _
  $region9: #{tpu_custom_call.1} parent=0 // pred_fallthru
    _
  %v12 = vld [vmem:[%s0] sm:$0xff]
  %v13 = vld [vmem:[%s0 + $0x8] sm:$0xff]
  %v14 = vld [vmem:[%s0 + $0x10] sm:$0xff]
  %v15 = vld [vmem:[%s0 + $0x18] sm:$0xff]
  %v16 = vld [vmem:[%s0 + $0x20] sm:$0xff]
  %v17 = vld [vmem:[%s0 + $0x28] sm:$0xff]
  %v18 = vld [vmem:[%s0 + $0x30] sm:$0xff]
  %v19 = vld [vmem:[%s0 + $0x38] sm:$0xff]
  %v20 = vpack.c.bf16 %v13, %v12
  %v21 = vpack.c.bf16 %v15, %v14
  %v22 = vpack.c.bf16 %v17, %v16
  %v23 = vpack.c.bf16 %v19, %v18
  %v24 = vld [vmem:[%s1] sm:$0xf]
  %v25 = vld [vmem:[%s1 + $0x4] sm:$0xf]
  %v26 = vld [vmem:[%s1 + $0x8] sm:$0xf]
  %v30 = vunpack.c.l.b16 %v24
  %v31 = vunpack.c.l.b16 %v25
  %v32 = vunpack.c.l.b16 %v26
  %v33 = vpack.c.b16 %v31, %v30
  %v34 = vpack.c.b16 %v32, %v32
  %vm36 = vcmask 195584
  %v38 = vsel %vm36, %v20, 0
  %v41 = vsel %vm36, %v21, 0
  %v44 = vsel %vm36, %v22, 0
  %v47 = vsel %vm36, %v23, 0
  %vm49 = vcmask 1043456
  %v51 = vsel %vm49, %v34, 0
  %53 = vmatprep.subr.bf16.mxu0 0
  %54 = vmatpush1.bf16.msra.mxu0 %v33
  %55 = vmatprep.subr.bf16.mxu0 0
  %56 = vmatpush1.bf16.msra.mxu0 %v51
  %57 = vmatprep.subr.bf16.mxu0 0
  %58 = vmatpush1.bf16.msra.mxu0 0
  %59 = vmatprep.subr.bf16.mxu0 0
  %60 = vmatpush1.bf16.msra.mxu0 0
  %61 = vmatprep.subr.bf16.mxu0 0
  %62 = vmatpush1.bf16.msra.mxu0 0
  %63 = vmatprep.subr.bf16.mxu0 0
  %64 = vmatpush1.bf16.msra.mxu0 0
  %65 = vmatprep.subr.bf16.mxu0 0
  %66 = vmatpush1.bf16.msra.mxu0 0
  %67 = vmatprep.subr.bf16.mxu0 0
  %68 = vmatpush1.bf16.msra.mxu0 0
  %69 = vmatprep.subr.bf16.mxu0 0
  %70 = vmatpush1.bf16.msra.mxu0 0
  %71 = vmatprep.subr.bf16.mxu0 0
  %72 = vmatpush1.bf16.msra.mxu0 0
  %73 = vmatprep.subr.bf16.mxu0 0
  %74 = vmatpush1.bf16.msra.mxu0 0
  %75 = vmatprep.subr.bf16.mxu0 0
  %76 = vmatpush1.bf16.msra.mxu0 0
  %77 = vmatprep.subr.bf16.mxu0 0
  %78 = vmatpush1.bf16.msra.mxu0 0
  %79 = vmatprep.subr.bf16.mxu0 0
  %80 = vmatpush1.bf16.msra.mxu0 0
  %81 = vmatprep.subr.bf16.mxu0 0
  %82 = vmatpush1.bf16.msra.mxu0 0
  %83 = vmatprep.subr.bf16.mxu0 0
  %84 = vmatpush1.bf16.msra.mxu0 0
  %85 = vmatprep.mubr.bf16.mxu0 0
  %86 = vmatmul.mubr.bf16.gmra.mrb[0].mxu0 %v38
  %v87 = vpop.f32.mrb[0].mxu0
  %v88 = vadd.f32 0.0, %v87
  %v89 = vpop.f32.mrb[0].mxu0
  %v90 = vpop.f32.mrb[0].mxu0
  %v91 = vadd.f32 0.0, %v90
  %v92 = vpop.f32.mrb[0].mxu0
  %93 = vmatprep.mubr.bf16.mxu0 0
  %94 = vmatmul.mubr.bf16.gmra.mrb[0].mxu0 %v41
  %v95 = vpop.f32.mrb[0].mxu0
  %v96 = vadd.f32 0.0, %v95
  %v97 = vpop.f32.mrb[0].mxu0
  %v98 = vpop.f32.mrb[0].mxu0
  %v99 = vadd.f32 0.0, %v98
  %v100 = vpop.f32.mrb[0].mxu0
  %101 = vmatprep.mubr.bf16.mxu0 0
  %102 = vmatmul.mubr.bf16.gmra.mrb[0].mxu0 %v44
  %v103 = vpop.f32.mrb[0].mxu0
  %v104 = vadd.f32 0.0, %v103
  %v105 = vpop.f32.mrb[0].mxu0
  %v106 = vpop.f32.mrb[0].mxu0
  %v107 = vadd.f32 0.0, %v106
  %v108 = vpop.f32.mrb[0].mxu0
  %109 = vmatprep.mubr.bf16.mxu0 0
  %110 = vmatmul.mubr.bf16.gmra.mrb[0].mxu0 %v47
  %v111 = vpop.f32.mrb[0].mxu0
  %v112 = vadd.f32 0.0, %v111
  %v113 = vpop.f32.mrb[0].mxu0
  %v114 = vpop.f32.mrb[0].mxu0
  %v115 = vadd.f32 0.0, %v114
  %v116 = vpop.f32.mrb[0].mxu0
  %117 = vdwg.mxu0
  %vm118 = vcmask 261120
  %119 = vst.msk [vmem:[%s2] sm:$0xff] %vm118, %v88
  %120 = vst.msk [vmem:[%s2 + $0x8] sm:$0xff] %vm118, %v91
  %121 = vst.msk [vmem:[%s2 + $0x10] sm:$0xff] %vm118, %v96
  %122 = vst.msk [vmem:[%s2 + $0x18] sm:$0xff] %vm118, %v99
  %123 = vst.msk [vmem:[%s2 + $0x20] sm:$0xff] %vm118, %v104
  %124 = vst.msk [vmem:[%s2 + $0x28] sm:$0xff] %vm118, %v107
  %125 = vst.msk [vmem:[%s2 + $0x30] sm:$0xff] %vm118, %v112
  %126 = vst.msk [vmem:[%s2 + $0x38] sm:$0xff] %vm118, %v115
  // Predicated region
  $region10: #{tpu_custom_call.1} parent=0 // pred_check
    _
  $region11: #{tpu_custom_call.1} parent=0 // pred_check_branch
    %128 = sbr.rel (0) target = $region13
  $region12: #{tpu_custom_call.1} parent=0 // pred_region
    _
  $region13: #{tpu_custom_call.1} parent=0 // pred_fallthru
    _
  // Predicated region
  $region14: #{tpu_custom_call.1} parent=0 // pred_check
    _
  $region15: #{tpu_custom_call.1} parent=0 // pred_check_branch
    %130 = sbr.rel (0) target = $region17
  $region16: #{tpu_custom_call.1} parent=0 // pred_region
    _
  $region17: #{tpu_custom_call.1} parent=0 // pred_fallthru
    _

</llo_original>
